<compile_context>
chip_gen: v7x
topology: tpu7x:2x2x1
jax: 0.10.0
libtpu: 0.0.40
codegen_flags: <defaults>
</compile_context>

<pallas_src>
import functools

import jax
import jax.numpy as jnp
from jax.experimental import pallas as pl
from jax.experimental.pallas import tpu as pltpu


SUB_POLICY = ("shearX", "translateY")   # only len(sub_policy) matters => L = 2
L = len(SUB_POLICY)


def _dada_aug_kernel(coef_ref, x_ref, out_ref):
    """coef_ref: SMEM f32[L+4] = [m_eff_0 .. m_eff_{L-1}, adds, tp_index, pre, post].
    x_ref / out_ref: VMEM (bm, LANE) tiles."""
    n_ops = coef_ref.shape[0] - 4
    images = x_ref[...]

    # Subtract the selected magnitudes one at a time (exact 0.0 for unset bits),
    # then add them back: matches the PyTorch float op order exactly.
    for i in range(n_ops):
        images = images - coef_ref[i]
    images = images + coef_ref[n_ops]          # + adds

    tp_idx = coef_ref[n_ops + 1]               # trans_probability(index)
    pre = coef_ref[n_ops + 2]                  # sum of tp(s) for s < index (ordered)
    post = coef_ref[n_ops + 3]                 # sum of tp(s) for s > index (ordered)
    out_ref[...] = ((pre + tp_idx * images) + post).astype(out_ref.dtype)


def _policy_coefficients(probability, probability_index, magnitude):
    """Fold the O(L * 2^L) scalar policy logic into L+4 floats, preserving the PyTorch
    accumulation order (adding/multiplying exact 0.0 / 1.0 where a term is excluded)."""
    prob = probability.astype(jnp.float32)
    mag = magnitude.astype(jnp.float32)
    pidx = probability_index.astype(jnp.int32)
    n_ops = prob.shape[0]

    # index = sum(probability_index[i] << i)
    index = jnp.int32(0)
    for i in range(n_ops):
        index = index + pidx[i] * jnp.int32(1 << i)

    # Magnitudes actually subtracted for the index selection.
    m_eff = [jnp.where(pidx[i] == 1, mag[i], jnp.float32(0.0)) for i in range(n_ops)]
    adds = jnp.float32(0.0)
    for i in range(n_ops):
        adds = adds + m_eff[i]

    # trans_probability for the index selection (ordered product, i ascending).
    tp_idx = jnp.float32(1.0)
    for i in range(n_ops):
        tp_idx = tp_idx * jnp.where(pidx[i] == 1, prob[i], 1.0 - prob[i])

    # Ordered sums of trans_probability over the non-index selections, split into the
    # parts accumulated before / after the index selection in the PyTorch loop.
    pre = jnp.float32(0.0)
    post = jnp.float32(0.0)
    for s in range(2 ** n_ops):
        tp_s = jnp.float32(1.0)
        for i in range(n_ops):
            tp_s = tp_s * (prob[i] if (s & (1 << i)) else (1.0 - prob[i]))
        pre = pre + jnp.where(jnp.int32(s) < index, tp_s, jnp.float32(0.0))
        post = post + jnp.where(jnp.int32(s) > index, tp_s, jnp.float32(0.0))

    return jnp.stack(m_eff + [adds, tp_idx, pre, post])


def _apply_policy_jnp(v, coef, n_ops):
    """Same float op order as the kernel body; used only for tiny non-lane-aligned tails."""
    for i in range(n_ops):
        v = v - coef[i]
    v = v + coef[n_ops]
    return (coef[n_ops + 2] + coef[n_ops + 1] * v) + coef[n_ops + 3]


def _round_up(a, b):
    return ((a + b - 1) // b) * b


def _pick_lane(total):
    for cand in (1024, 512, 256, 128):
        if total % cand == 0:
            return cand
    # No exact fit: process the lane-aligned prefix in the kernel, the (<lane) tail in JAX.
    return 1024 if total >= 8 * 1024 else 128


def _pick_bm(rows, lane):
    """Row-block size: ~8 MiB f32 blocks; prefer an even block count (v7x: 2 TCs)."""
    if rows <= 8:
        return max(rows, 1)                       # full-extent block (tiny inputs)
    target_elems = (8 << 20) // 4                 # 8 MiB of f32 per block
    bm = min(rows, max(8, (target_elems // lane) // 8 * 8))
    grid_m = pl.cdiv(rows, bm)
    if grid_m % 2 == 1:
        # Nudge to an even number of blocks so the parallel grid splits evenly across
        # v7x's two TensorCores; slightly smaller blocks, harmless on v5e/v6e.
        bm_even = _round_up(pl.cdiv(rows, grid_m + 1), 8)
        if 8 <= bm_even <= rows and pl.cdiv(rows, bm_even) % 2 == 0:
            bm = bm_even
    return bm


def _augment_impl(x, probability, probability_index, magnitude, *, alias_input=False):
    """x: f32[N, C, H, W] (any shape; treated elementwise). probability/magnitude: f32[L].
    probability_index: i32[L]. f32-only contract for the image tensor."""
    orig_shape = x.shape
    total = x.size
    n_ops = probability.shape[0]
    coef = _policy_coefficients(probability, probability_index, magnitude)

    xf = x.reshape(-1)
    lane = _pick_lane(total)
    main = (total // lane) * lane

    if main == 0:
        # Degenerate tiny input: plain elementwise JAX with the same op order.
        return _apply_policy_jnp(xf, coef, n_ops).astype(x.dtype).reshape(orig_shape)

    rows = main // lane
    bm = _pick_bm(rows, lane)
    grid_m = pl.cdiv(rows, bm)

    x2 = xf[:main].reshape(rows, lane)            # pure reshape when main == total

    out2 = pl.pallas_call(
        _dada_aug_kernel,
        out_shape=jax.ShapeDtypeStruct((rows, lane), x.dtype),
        grid=(grid_m,),
        in_specs=[
            pl.BlockSpec(memory_space=pltpu.MemorySpace.SMEM),   # folded coefficients
            # On v7x one may additionally try pipeline_mode=pl.Buffered(3) here (measure).
            pl.BlockSpec((bm, lane), lambda i: (i, 0)),          # images
        ],
        out_specs=pl.BlockSpec((bm, lane), lambda i: (i, 0)),
        compiler_params=pltpu.CompilerParams(
            dimension_semantics=("parallel",),
            vmem_limit_bytes=48 << 20,            # 8 MiB blocks x 2 bufs x (in+out) = 32 MiB
        ),
        cost_estimate=pl.CostEstimate(
            flops=(n_ops + 4) * main,
            transcendentals=0,
            bytes_accessed=2 * main * x.dtype.itemsize,
        ),
        input_output_aliases=({1: 0} if alias_input else {}),
    )(coef, x2)

    out = out2.reshape(-1)
    if main != total:
        # Tiny (< lane) tail: same op order, negligible cost, no full-array pad/copy.
        tail = _apply_policy_jnp(xf[main:], coef, n_ops).astype(x.dtype)
        out = jnp.concatenate([out, tail])
    return out.reshape(orig_shape)


# Default entry point (no buffer aliasing; safe when the caller keeps x alive).
differentiable_augment = jax.jit(functools.partial(_augment_impl, alias_input=False))

# In-place variant: output reuses x's HBM buffer (caller must not use x afterwards).
differentiable_augment_inplace = jax.jit(
    functools.partial(_augment_impl, alias_input=True), donate_argnums=(0,))


def _reference_forward(x, probability, probability_index, magnitude):
    """Pure-JAX replica of the PyTorch loop (host-side index, exact op order)."""
    n_ops = probability.shape[0]
    index = 0
    for i in range(n_ops):
        index += int(probability_index[i]) * (1 << i)
    com_image = jnp.zeros((), dtype=x.dtype)   # scalar until the index selection
    images = x
    adds = jnp.zeros((), dtype=x.dtype)
    for selection in range(2 ** n_ops):
        trans_probability = jnp.ones((), dtype=x.dtype)
        for i in range(n_ops):
            if selection & (1 << i):
                trans_probability = trans_probability * probability[i]
                if selection == index:
                    images = images - magnitude[i]
                    adds = adds + magnitude[i]
            else:
                trans_probability = trans_probability * (1.0 - probability[i])
        if selection == index:
            images = images + adds
            com_image = com_image + trans_probability * images
        else:
            com_image = com_image + trans_probability
    return com_image


if __name__ == "__main__":
    key = jax.random.PRNGKey(0)
    kx, kp, kidx, km = jax.random.split(key, 4)

    N, C, H, W = 2, 4, 16, 16
    x = jax.random.normal(kx, (N, C, H, W), dtype=jnp.float32)
    probability = jax.random.uniform(kp, (L,), dtype=jnp.float32)
    probability_index = jax.random.bernoulli(kidx, 0.5, (L,)).astype(jnp.int32)
    magnitude = jax.random.uniform(km, (L,), dtype=jnp.float32)

    ref = _reference_forward(x, probability, probability_index, magnitude)

    out = differentiable_augment(x, probability, probability_index, magnitude)
    out = jax.block_until_ready(out)

    assert out.shape == (N, C, H, W)
    assert jnp.allclose(out, ref, atol=1e-6, rtol=1e-6), "mismatch vs reference"

    print("KERNEL_OK")
</pallas_src>

<mosaic_0001>
module attributes {stable_mosaic.version = 11 : i64} {
  func.func @_dada_aug_kernel(%arg0: i32, %arg1: memref<6xf32, #tpu.memory_space<smem>>, %arg2: memref<2x1024xf32, #tpu.memory_space<vmem>>, %arg3: memref<2x1024xf32, #tpu.memory_space<vmem>>) attributes {dimension_semantics = [#tpu.dimension_semantics<parallel>], iteration_bounds = array<i64: 1>, scalar_prefetch = 0 : i64, scratch_operands = 0 : i64, tpu.core_type = #tpu.core_type<tc>, window_params = [{transform_indices = @transform_0, window_bounds = array<i64: 6>}, {transform_indices = @transform_1, window_bounds = array<i64: 2, 1024>}, {transform_indices = @transform_2, window_bounds = array<i64: 2, 1024>}]} {
    %c0 = arith.constant 0 : index
    %c0_0 = arith.constant 0 : index
    %0 = vector.load %arg2[%c0, %c0_0] : memref<2x1024xf32, #tpu.memory_space<vmem>>, vector<2x1024xf32>
    %c0_1 = arith.constant 0 : index
    %1 = memref.load %arg1[%c0_1] : memref<6xf32, #tpu.memory_space<smem>>
    %2 = vector.broadcast %1 : f32 to vector<2x1024xf32>
    %3 = arith.subf %0, %2 : vector<2x1024xf32>
    %c1 = arith.constant 1 : index
    %4 = memref.load %arg1[%c1] : memref<6xf32, #tpu.memory_space<smem>>
    %5 = vector.broadcast %4 : f32 to vector<2x1024xf32>
    %6 = arith.subf %3, %5 : vector<2x1024xf32>
    %c2 = arith.constant 2 : index
    %7 = memref.load %arg1[%c2] : memref<6xf32, #tpu.memory_space<smem>>
    %8 = vector.broadcast %7 : f32 to vector<2x1024xf32>
    %9 = arith.addf %6, %8 : vector<2x1024xf32>
    %c3 = arith.constant 3 : index
    %10 = memref.load %arg1[%c3] : memref<6xf32, #tpu.memory_space<smem>>
    %c4 = arith.constant 4 : index
    %11 = memref.load %arg1[%c4] : memref<6xf32, #tpu.memory_space<smem>>
    %c5 = arith.constant 5 : index
    %12 = memref.load %arg1[%c5] : memref<6xf32, #tpu.memory_space<smem>>
    %13 = vector.broadcast %10 : f32 to vector<2x1024xf32>
    %14 = arith.mulf %13, %9 : vector<2x1024xf32>
    %15 = vector.broadcast %11 : f32 to vector<2x1024xf32>
    %16 = arith.addf %15, %14 : vector<2x1024xf32>
    %17 = vector.broadcast %12 : f32 to vector<2x1024xf32>
    %18 = arith.addf %16, %17 : vector<2x1024xf32>
    %c0_2 = arith.constant 0 : index
    %c0_3 = arith.constant 0 : index
    %19 = vector.load %arg3[%c0_2, %c0_3] : memref<2x1024xf32, #tpu.memory_space<vmem>>, vector<2x1024xf32>
    tpu.vector_store %arg3[%c0_2, %c0_3], %18 {strides = array<i32>} : memref<2x1024xf32, #tpu.memory_space<vmem>>, vector<2x1024xf32>,
    return
  }
  func.func @transform_0(%arg0: i32) -> i32 {
    %c0_i32 = arith.constant 0 : i32
    %c0_i32_0 = arith.constant 0 : i32
    return %c0_i32 : i32
  }
  func.func @transform_1(%arg0: i32) -> (i32, i32) {
    %c0_i32 = arith.constant 0 : i32
    %c0_i32_0 = arith.constant 0 : i32
    return %arg0, %c0_i32 : i32, i32
  }
  func.func @transform_2(%arg0: i32) -> (i32, i32) {
    %c0_i32 = arith.constant 0 : i32
    %c0_i32_0 = arith.constant 0 : i32
    return %arg0, %c0_i32 : i32, i32
  }
}

</mosaic_0001>

<llo_original>
// kernel: _augment_impl.1
$region0: #{_augment_impl.1}
  #allocation0 [shape = 'u32[]', space=smem, size = 0x4, offset = 0x4, fixed_abs, tag = 'smem constant byte address 0x4 - core index']
  #allocation1 [shape = 'u32[144,128]{1,0:T(1,128)}', space=vmem, size = 0x12000, scoped, tag = 'internal scratch']
  %s0 = inlined_call_operand.vmem [shape: f32[6], index: 0, kind: input, shape index: {}]
  %s1 = inlined_call_operand.vmem [shape: f32[2,1024], index: 1, kind: input, shape index: {}]
  %s2 = inlined_call_operand.vmem [shape: f32[2,1024], index: 2, kind: output, shape index: {}]
  %s3 = sld [smem:[#allocation0]]
  $region22: #{_augment_impl.1} parent=0
    _
  %s5 = ssub.s32 1, %s3
  %s6 = scalar_select 0, %s5, %s3
  $region1: #{_augment_impl.1} parent=0
    #allocation2 [shape = 'u8[512]{0}', space=smem, size = 0x200, scoped, tag = 'input window, operand 0, single buffered']
    #allocation3 [shape = 's32[1]{0}', space=sflag, size = 0x4, scoped, tag = 'scoped memory for _augment_impl.1']
    %7 = vsyncpa [#allocation3], 0
    // Predicated region
    $region2: #{_augment_impl.1} parent=1 // pred_check
      _
    $region3: #{_augment_impl.1} parent=1 // pred_check_branch
      %9 = sbr.rel (0) target = $region5
    $region4: #{_augment_impl.1} parent=1 // pred_region
      %s11 = ssub.s32 16, 16
      %12 = vsyncadd [#allocation3], %s11
      %s14 = sshll.u32 %s0, 4
      %s15 = int_to_ptr.vmem [resolvable:$true] %s14
      %17 = dma.vmem_to_smem %s15, 16, [#allocation2], [#allocation3]
    $region5: #{_augment_impl.1} parent=1 // pred_fallthru
      _
    // Predicated region
    $region6: #{_augment_impl.1} parent=1 // pred_check
      _
    $region7: #{_augment_impl.1} parent=1 // pred_check_branch
      %19 = sbr.rel (0) target = $region9
    $region8: #{_augment_impl.1} parent=1 // pred_region
      _
    $region9: #{_augment_impl.1} parent=1 // pred_fallthru
      _
    // Predicated region
    $region10: #{_augment_impl.1} parent=1 // pred_check
      _
    $region11: #{_augment_impl.1} parent=1 // pred_check_branch
      %21 = sbr.rel (0) target = $region13
    $region12: #{_augment_impl.1} parent=1 // pred_region
      %22 = dma.done [#allocation3], 16
    $region13: #{_augment_impl.1} parent=1 // pred_fallthru
      _
    %23 = sfence
    %v24 = vld [vmem:[%s1] sm:$0xff]
    %v25 = vld [vmem:[%s1 + $0x8] sm:$0xff]
    %s26 = sld [smem:[#allocation2]]
    %v27 = vstv %s26
    %v28 = vsub.f32 %v24, %v27
    %v29 = vsub.f32 %v25, %v27
    %s30 = sld [smem:[#allocation2 + $0x1]]
    %v31 = vstv %s30
    %v32 = vsub.f32 %v28, %v31
    %v33 = vsub.f32 %v29, %v31
    %s34 = sld [smem:[#allocation2 + $0x2]]
    %v35 = vstv %s34
    %v36 = vadd.f32 %v32, %v35
    %v37 = vadd.f32 %v33, %v35
    %s38 = sld [smem:[#allocation2 + $0x3]]
    %s39 = sld [smem:[#allocation2 + $0x4]]
    %s40 = sld [smem:[#allocation2 + $0x5]]
    %v41 = vstv %s38
    %v42 = vmul.f32 %v41, %v36
    %v43 = vmul.f32 %v41, %v37
    %v44 = vstv %s39
    %v45 = vadd.f32 %v44, %v42
    %v46 = vadd.f32 %v44, %v43
    %v47 = vstv %s40
    %v48 = vadd.f32 %v45, %v47
    %v49 = vadd.f32 %v46, %v47
    %50 = vst [vmem:[%s2] sm:$0xff] %v48
    %51 = vst [vmem:[%s2 + $0x8] sm:$0xff] %v49
    // Predicated region
    $region14: #{_augment_impl.1} parent=1 // pred_check
      _
    $region15: #{_augment_impl.1} parent=1 // pred_check_branch
      %53 = sbr.rel (0) target = $region17
    $region16: #{_augment_impl.1} parent=1 // pred_region
      _
    $region17: #{_augment_impl.1} parent=1 // pred_fallthru
      _
    // Predicated region
    $region18: #{_augment_impl.1} parent=1 // pred_check
      _
    $region19: #{_augment_impl.1} parent=1 // pred_check_branch
      %55 = sbr.rel (0) target = $region21
    $region20: #{_augment_impl.1} parent=1 // pred_region
      _
    $region21: #{_augment_impl.1} parent=1 // pred_fallthru
      _
    %56 = vsyncpa [#allocation3], 1

</llo_original>
